<compile_context>
chip_gen: v6e
topology: v6e:2x2x1
jax: 0.10.0
libtpu: 0.0.40
codegen_flags: <defaults>
</compile_context>

<pallas_src>
import functools
import math

import jax
import jax.numpy as jnp
from jax.experimental import pallas as pl
from jax.experimental.pallas import tpu as pltpu


_LANE = 512            # lane-dense last dim (multiple of 128)
_MAX_TILE_ROWS = 1024  # (1024, 512) f32 = 2 MiB per block


def _round_up(n, m):
    return ((n + m - 1) // m) * m


def _term_value(func_type, a, b, c, x):
    """SymbolicTerm.compute() body on an already safe-clamped x (pure jnp, elementwise)."""
    t = b * x + c
    if func_type == 'sin':
        return a * jnp.sin(t)
    elif func_type == 'cos':
        return a * jnp.cos(t)
    elif func_type == 'tan':
        return a * jnp.tan(t)
    elif func_type == 'csc':
        return a / jnp.sin(t)
    elif func_type == 'sec':
        return a / jnp.cos(t)
    elif func_type == 'cot':
        return a / jnp.tan(t)
    elif func_type == 'arcsin':
        return a * jnp.arcsin(jnp.clip(t, -1.0 + 1e-3, 1.0 - 1e-3))
    elif func_type == 'arccos':
        return a * jnp.arccos(jnp.clip(t, -1.0 + 1e-3, 1.0 - 1e-3))
    elif func_type == 'arctan':
        return a * jnp.arctan(t)
    elif func_type == 'exp':
        return a * jnp.exp(jnp.minimum(t, 10.0))
    elif func_type == 'log':
        return a * jnp.log(jnp.maximum(t, 1e-3))
    elif func_type == 'poly1':
        return a * x + b
    elif func_type == 'poly2':
        return a * x * x + b * x + c
    elif func_type == 'poly3':
        return a * x * x * x + b * x * x + c
    elif func_type == 'cheby2':
        return a * (2.0 * x * x - 1.0)
    elif func_type == 'cheby3':
        return a * (4.0 * x * x * x - 3.0 * x)
    elif func_type == 'leg2':
        return a * (0.5 * (3.0 * x * x - 1.0))
    elif func_type == 'leg3':
        return a * (0.5 * (5.0 * x * x * x - 3.0 * x))
    else:
        return a * x


def _symbolic_term_kernel(params_ref, x_ref, o_ref, *, func_type, neighbor_func_type):
    # params (SMEM f32[8]): [a, b, c, scale_main, na, nb, nc, scale_side]
    #   scale_main = (softmax(route)[0] - softmax(route)[1]) * weight   (fwd + bwd folded)
    #   scale_side = softmax(route)[2]                                   (0 if no neighbor)
    a = params_ref[0]
    b = params_ref[1]
    c = params_ref[2]
    scale_main = params_ref[3]

    x = jnp.clip(x_ref[...], 1e-6, 1e6)  # safe_input
    out = scale_main * _term_value(func_type, a, b, c, x)

    if neighbor_func_type is not None:      # static (Python-level) branch
        na = params_ref[4]
        nb = params_ref[5]
        nc = params_ref[6]
        scale_side = params_ref[7]
        out = out + scale_side * _term_value(neighbor_func_type, na, nb, nc, x)

    o_ref[...] = out


def symbolic_term_forward(x, params, func_type='sin',
                          neighbor_params=None, neighbor_func_type=None):
    """Pallas implementation of SymbolicTerm.forward(x, neighbor).

    params:  dict with 'a','b','c','weight' (shape (1,)) and 'route' (shape (3,))
    neighbor_params (optional): dict with 'a','b','c' of the neighbor term.
    """
    orig_shape = x.shape
    x = x.astype(jnp.float32)

    a = jnp.asarray(params['a'], jnp.float32).reshape(())
    b = jnp.asarray(params['b'], jnp.float32).reshape(())
    c = jnp.asarray(params['c'], jnp.float32).reshape(())
    weight = jnp.asarray(params['weight'], jnp.float32).reshape(())
    route = jnp.asarray(params['route'], jnp.float32).reshape(3)

    # Tiny parameter-only scalar preamble (3-wide softmax) done in the wrapper.
    rw = jax.nn.softmax(route)
    scale_main = (rw[0] - rw[1]) * weight

    if neighbor_params is not None:
        na = jnp.asarray(neighbor_params['a'], jnp.float32).reshape(())
        nb = jnp.asarray(neighbor_params['b'], jnp.float32).reshape(())
        nc = jnp.asarray(neighbor_params['c'], jnp.float32).reshape(())
        scale_side = rw[2]
    else:
        neighbor_func_type = None
        na = nb = nc = scale_side = jnp.float32(0.0)

    param_vec = jnp.stack([a, b, c, scale_main, na, nb, nc, scale_side])

    # ---- lane-dense padded 2-D slab -------------------------------------
    total = int(math.prod(orig_shape)) if orig_shape else 1
    rows = max(1, -(-total // _LANE))
    tile_rows = min(_MAX_TILE_ROWS, _round_up(rows, 8))
    rows_padded = _round_up(rows, tile_rows)
    padded_total = rows_padded * _LANE
    pad = padded_total - total

    x_flat = x.reshape(-1)
    if pad > 0:
        x_flat = jnp.pad(x_flat, (0, pad))  # pad values are harmless (clamped in-kernel)
    x2d = x_flat.reshape(rows_padded, _LANE)

    grid = rows_padded // tile_rows
    n_terms = 2 if neighbor_func_type is not None else 1

    alias_kwargs = {}
    if pad > 0:
        # padded slab is guaranteed to be a fresh buffer -> safe to donate/alias.
        alias_kwargs['input_output_aliases'] = {1: 0}

    kernel = functools.partial(_symbolic_term_kernel,
                               func_type=func_type,
                               neighbor_func_type=neighbor_func_type)

    out2d = pl.pallas_call(
        kernel,
        out_shape=jax.ShapeDtypeStruct((rows_padded, _LANE), jnp.float32),
        grid_spec=pltpu.PrefetchScalarGridSpec(
            num_scalar_prefetch=0,
            grid=(grid,),
            in_specs=[
                pl.BlockSpec(memory_space=pltpu.SMEM),             # scalar params
                pl.BlockSpec((tile_rows, _LANE), lambda i: (i, 0)),  # x tile
            ],
            out_specs=pl.BlockSpec((tile_rows, _LANE), lambda i: (i, 0)),
        ),
        compiler_params=pltpu.CompilerParams(
            dimension_semantics=("parallel",)),
        cost_estimate=pl.CostEstimate(
            flops=8 * padded_total * n_terms,
            transcendentals=padded_total * n_terms,
            bytes_accessed=8 * padded_total),
        **alias_kwargs,
    )(param_vec, x2d)

    return out2d.reshape(-1)[:total].reshape(orig_shape)


def _ref_forward(x, params, func_type, neighbor_params=None, neighbor_func_type=None):
    """Pure-JAX mirror of SymbolicTerm.forward for correctness checking."""
    xs = jnp.clip(x, 1e-6, 1e6)
    value = _term_value(func_type, params['a'][0], params['b'][0], params['c'][0], xs)
    rw = jax.nn.softmax(jnp.asarray(params['route'], jnp.float32))
    fwd = rw[0] * params['weight'][0] * value
    bwd = -rw[1] * params['weight'][0] * value
    if neighbor_params is not None:
        side = rw[2] * _term_value(neighbor_func_type,
                                   neighbor_params['a'][0],
                                   neighbor_params['b'][0],
                                   neighbor_params['c'][0], xs)
    else:
        side = 0.0
    return fwd + bwd + side


if __name__ == "__main__":
    key = jax.random.PRNGKey(0)
    keys = jax.random.split(key, 9)

    # Small example input, arbitrary (...,) shape — elementwise op.
    x = jax.random.normal(keys[0], (2, 8, 32), jnp.float32)

    # Deterministic "parameters" mirroring nn.Parameter(torch.randn(...)).
    params = {
        'a': jax.random.normal(keys[1], (1,), jnp.float32),
        'b': jax.random.normal(keys[2], (1,), jnp.float32),
        'c': jax.random.normal(keys[3], (1,), jnp.float32),
        'weight': jax.random.normal(keys[4], (1,), jnp.float32),
        'route': jax.random.normal(keys[5], (3,), jnp.float32),
    }
    neighbor_params = {
        'a': jax.random.normal(keys[6], (1,), jnp.float32),
        'b': jax.random.normal(keys[7], (1,), jnp.float32),
        'c': jax.random.normal(keys[8], (1,), jnp.float32),
    }

    # forward(x)  (neighbor=None, default func_type='sin')
    y1 = symbolic_term_forward(x, params, func_type='sin')
    jax.block_until_ready(y1)
    y1_ref = _ref_forward(x, params, 'sin')
    assert y1.shape == x.shape
    assert jnp.allclose(y1, y1_ref, atol=1e-5, rtol=1e-5)

    # forward(x, neighbor)  (side term fused in the same kernel, neighbor is 'cos')
    y2 = symbolic_term_forward(x, params, func_type='sin',
                               neighbor_params=neighbor_params,
                               neighbor_func_type='cos')
    jax.block_until_ready(y2)
    y2_ref = _ref_forward(x, params, 'sin', neighbor_params, 'cos')
    assert jnp.allclose(y2, y2_ref, atol=1e-5, rtol=1e-5)

    print("KERNEL_OK")
</pallas_src>

<mosaic_0001>
module attributes {stable_mosaic.version = 11 : i64} {
  func.func @_symbolic_term_kernel(%arg0: i32, %arg1: memref<8xf32, #tpu.memory_space<smem>>, %arg2: memref<8x512xf32, #tpu.memory_space<vmem>>, %arg3: memref<8x512xf32, #tpu.memory_space<vmem>>) attributes {dimension_semantics = [#tpu.dimension_semantics<parallel>], iteration_bounds = array<i64: 1>, scalar_prefetch = 0 : i64, scratch_operands = 0 : i64, tpu.core_type = #tpu.core_type<tc>, window_params = [{transform_indices = @transform_0, window_bounds = array<i64: 8>}, {transform_indices = @transform_1, window_bounds = array<i64: 8, 512>}, {transform_indices = @transform_2, window_bounds = array<i64: 8, 512>}]} {
    %c0 = arith.constant 0 : index
    %0 = memref.load %arg1[%c0] : memref<8xf32, #tpu.memory_space<smem>>
    %c1 = arith.constant 1 : index
    %1 = memref.load %arg1[%c1] : memref<8xf32, #tpu.memory_space<smem>>
    %c2 = arith.constant 2 : index
    %2 = memref.load %arg1[%c2] : memref<8xf32, #tpu.memory_space<smem>>
    %c3 = arith.constant 3 : index
    %3 = memref.load %arg1[%c3] : memref<8xf32, #tpu.memory_space<smem>>
    %c0_0 = arith.constant 0 : index
    %c0_1 = arith.constant 0 : index
    %4 = vector.load %arg2[%c0_0, %c0_1] : memref<8x512xf32, #tpu.memory_space<vmem>>, vector<8x512xf32>
    %cst = arith.constant 9.99999997E-7 : f32
    %cst_2 = arith.constant 1.000000e+06 : f32
    %5 = vector.broadcast %cst : f32 to vector<8x512xf32>
    %6 = arith.maximumf %5, %4 : vector<8x512xf32>
    %7 = vector.broadcast %cst_2 : f32 to vector<8x512xf32>
    %8 = arith.minimumf %7, %6 : vector<8x512xf32>
    %9 = vector.broadcast %1 : f32 to vector<8x512xf32>
    %10 = arith.mulf %9, %8 : vector<8x512xf32>
    %11 = vector.broadcast %2 : f32 to vector<8x512xf32>
    %12 = arith.addf %10, %11 : vector<8x512xf32>
    %13 = math.sin %12 : vector<8x512xf32>
    %14 = vector.broadcast %0 : f32 to vector<8x512xf32>
    %15 = arith.mulf %14, %13 : vector<8x512xf32>
    %16 = vector.broadcast %3 : f32 to vector<8x512xf32>
    %17 = arith.mulf %16, %15 : vector<8x512xf32>
    %c0_3 = arith.constant 0 : index
    %c0_4 = arith.constant 0 : index
    %18 = vector.load %arg3[%c0_3, %c0_4] : memref<8x512xf32, #tpu.memory_space<vmem>>, vector<8x512xf32>
    tpu.vector_store %arg3[%c0_3, %c0_4], %17 {strides = array<i32>} : memref<8x512xf32, #tpu.memory_space<vmem>>, vector<8x512xf32>,
    return
  }
  func.func @transform_0(%arg0: i32) -> i32 {
    %c0_i32 = arith.constant 0 : i32
    %c0_i32_0 = arith.constant 0 : i32
    return %c0_i32 : i32
  }
  func.func @transform_1(%arg0: i32) -> (i32, i32) {
    %c0_i32 = arith.constant 0 : i32
    %c0_i32_0 = arith.constant 0 : i32
    return %arg0, %c0_i32 : i32, i32
  }
  func.func @transform_2(%arg0: i32) -> (i32, i32) {
    %c0_i32 = arith.constant 0 : i32
    %c0_i32_0 = arith.constant 0 : i32
    return %arg0, %c0_i32 : i32, i32
  }
}

</mosaic_0001>

<llo_original>
// kernel: tpu_custom_call.1
$region0: #{tpu_custom_call.1}
  #allocation0 [shape = 'u32[]', space=smem, size = 0x4, offset = 0x4, fixed_abs, tag = 'smem constant byte address 0x4 - core index']
  #allocation1 [shape = 'u32[144,128]{1,0:T(1,128)}', space=vmem, size = 0x12000, scoped, tag = 'internal scratch']
  %s0 = inlined_call_operand.vmem [shape: f32[8], index: 0, kind: input, shape index: {}]
  %s1 = inlined_call_operand.hbm [shape: f32[8,512], index: 1, kind: input, shape index: {}, may-alias: {1,2}]
  %s2 = inlined_call_operand.hbm [shape: f32[8,512], index: 2, kind: output, shape index: {}, may-alias: {1,2}]
  %s3 = sld [smem:[#allocation0]]
  $region26: #{tpu_custom_call.1} parent=0
    _
  %s5 = ssub.s32 1, %s3
  %s6 = scalar_select 0, %s5, %s3
  $region1: #{tpu_custom_call.1} parent=0
    #allocation2 [shape = 'u8[512]{0}', space=smem, size = 0x200, scoped, tag = 'input window, operand 0, single buffered']
    #allocation3 [shape = 's32[1]{0}', space=sflag, size = 0x4, scoped, tag = 'scoped memory for tpu_custom_call.1']
    #allocation4 [shape = 's32[1]{0}', space=sflag, size = 0x4, scoped, tag = 'scoped memory for tpu_custom_call.1']
    #allocation5 [shape = 's32[1]{0}', space=sflag, size = 0x4, scoped, tag = 'scoped memory for tpu_custom_call.1']
    #allocation6 [shape = 'u8[16384]{0}', space=vmem, size = 0x4000, scoped, tag = 'input window, operand 1, single buffered']
    #allocation7 [shape = 'u8[16384]{0}', space=vmem, size = 0x4000, scoped, tag = 'output window, operand 0, single buffered']
    %7 = vsyncpa [#allocation5], 0
    %8 = vsyncpa [#allocation3], 0
    %9 = vsyncpa [#allocation4], 0
    // Predicated region
    $region2: #{tpu_custom_call.1} parent=1 // pred_check
      _
    $region3: #{tpu_custom_call.1} parent=1 // pred_check_branch
      %11 = sbr.rel (0) target = $region5
    $region4: #{tpu_custom_call.1} parent=1 // pred_region
      %s13 = ssub.s32 16, 16
      %14 = vsyncadd [#allocation5], %s13
      %s16 = sshll.u32 %s0, 4
      %s17 = int_to_ptr.vmem [resolvable:$true] %s16
      %19 = dma.vmem_to_smem %s17, 16, [#allocation2], [#allocation5]
    $region5: #{tpu_custom_call.1} parent=1 // pred_fallthru
      _
    // Predicated region
    $region6: #{tpu_custom_call.1} parent=1 // pred_check
      _
    $region7: #{tpu_custom_call.1} parent=1 // pred_check_branch
      %21 = sbr.rel (0) target = $region9
    $region8: #{tpu_custom_call.1} parent=1 // pred_region
      %s23 = ssub.s32 512, 512
      %24 = vsyncadd [#allocation3], %s23
      %s26 = sshll.u32 [#allocation6], 4
      %s27 = int_to_ptr.vmem [resolvable:$true] %s26
      %29 = dma.hbm_to_vmem [thread:$0]  %s1, 512, %s27, [#allocation3]
    $region9: #{tpu_custom_call.1} parent=1 // pred_fallthru
      _
    // Predicated region
    $region10: #{tpu_custom_call.1} parent=1 // pred_check
      _
    $region11: #{tpu_custom_call.1} parent=1 // pred_check_branch
      %31 = sbr.rel (0) target = $region13
    $region12: #{tpu_custom_call.1} parent=1 // pred_region
      %32 = dma.done [#allocation5], 16
    $region13: #{tpu_custom_call.1} parent=1 // pred_fallthru
      _
    // Predicated region
    $region14: #{tpu_custom_call.1} parent=1 // pred_check
      _
    $region15: #{tpu_custom_call.1} parent=1 // pred_check_branch
      %34 = sbr.rel (0) target = $region17
    $region16: #{tpu_custom_call.1} parent=1 // pred_region
      %35 = dma.done [#allocation3], 512
    $region17: #{tpu_custom_call.1} parent=1 // pred_fallthru
      _
    %36 = sfence
    %s37 = sld [smem:[#allocation2]]
    %s38 = sld [smem:[#allocation2 + $0x1]]
    %s39 = sld [smem:[#allocation2 + $0x2]]
    %s40 = sld [smem:[#allocation2 + $0x3]]
    %v41 = vld [vmem:[#allocation6] sm:$0xff]
    %v42 = vld [vmem:[#allocation6 + $0x8] sm:$0xff]
    %v43 = vld [vmem:[#allocation6 + $0x10] sm:$0xff]
    %v44 = vld [vmem:[#allocation6 + $0x18] sm:$0xff]
    %v45 = vmax.f32 %v41, 1e-06
    %v46 = vmax.f32 %v42, 1e-06
    %v47 = vmax.f32 %v43, 1e-06
    %v48 = vmax.f32 %v44, 1e-06
    %v49 = vmin.f32 %v45, 1000000.0
    %v50 = vmin.f32 %v46, 1000000.0
    %v51 = vmin.f32 %v47, 1000000.0
    %v52 = vmin.f32 %v48, 1000000.0
    %v53 = vstv %s38
    %v54 = vmul.f32 %v53, %v49
    %v55 = vmul.f32 %v53, %v50
    %v56 = vmul.f32 %v53, %v51
    %v57 = vmul.f32 %v53, %v52
    %v58 = vstv %s39
    %v59 = vadd.f32 %v54, %v58
    %v60 = vadd.f32 %v55, %v58
    %v61 = vadd.f32 %v56, %v58
    %v62 = vadd.f32 %v57, %v58
    %v63 = vand.u32 2147483647, %v59
    %vm64 = vcmp.le.f32.partialorder %v63, 0.7853982
    %vm65 = vcmp.lt.s32.totalorder %v59, 0
    %v66 = vand.u32 %v59, 2139095040
    %v67 = vshrl.u32 %v66, 23
    %v68 = vsub.s32 %v67, 127
    %v69 = vand.u32 2147483647, %v59
    %v70 = vand.u32 %v69, 8388607
    %v71 = vor.u32 %v70, 8388608
    %v72 = vsub.s32 0, %v71
    %v73 = vadd.s32 %v68, 1
    %vm74 = vcmp.gt.s32.totalorder %v73, 0
    %v75 = vsel %vm74, %v73, 0
    %v76 = vshrl.u32 %v75, 5
    %v77 = vand.u32 %v75, 31
    %v78 = vsub.s32 32, %v77
    %v79 = vshrl.u32 683565275, %v78
    %v80 = vshll.u32 683565275, %v77
    %v81 = vshrl.u32 2475754826, %v78
    %v82 = vor.u32 %v80, %v81
    %v83 = vshll.u32 2475754826, %v77
    %v84 = vshrl.u32 2131351028, %v78
    %v85 = vor.u32 %v83, %v84
    %v86 = vshll.u32 2131351028, %v77
    %v87 = vshrl.u32 2102212464, %v78
    %v88 = vor.u32 %v86, %v87
    %v89 = vshll.u32 2102212464, %v77
    %v90 = vshrl.u32 920167782, %v78
    %v91 = vor.u32 %v89, %v90
    %v92 = vshll.u32 920167782, %v77
    %v93 = vshrl.u32 1326507024, %v78
    %v94 = vor.u32 %v92, %v93
    %vm95 = vcmp.lt.s32.totalorder %v76, 1
    %vm96 = vcmp.lt.s32.totalorder %v76, 2
    %vm97 = vcmp.lt.s32.totalorder %v76, 3
    %vm98 = vcmp.lt.s32.totalorder %v76, 4
    %v99 = vsel %vm95, %v79, %v82
    %v100 = vsel %vm98, %v88, 2102212464
    %v101 = vsel %vm97, %v85, %v100
    %v102 = vsel %vm96, %v99, %v101
    %v103 = vsel %vm95, %v82, %v85
    %v104 = vsel %vm98, %v91, 920167782
    %v105 = vsel %vm97, %v88, %v104
    %v106 = vsel %vm96, %v103, %v105
    %v107 = vsel %vm95, %v85, %v88
    %v108 = vsel %vm98, %v94, 1326507024
    %v109 = vsel %vm97, %v91, %v108
    %v110 = vsel %vm96, %v107, %v109
    %v111 = vshll.u32 %v71, 8
    %v112 = vmul.u32.u64.compose %v111, %v110
    %v113 = vextract.low.u32 %v112
    %v114 = vextract.high.u32 %v112
    %v115 = vmul.u32.u64.compose %v111, %v106
    %v116 = vextract.low.u32 %v115
    %v117 = vextract.high.u32 %v115
    %v118 = vmul.u32 %v111, %v102
    %v119 = vadd.s32 %v114, %v116
    %vm120 = vc.u32 %v114, %v116
    %v121 = vadd.s32 %v117, 1
    %v122 = vsel %vm120, %v121, %v117
    %v123 = vadd.s32 %v118, %v122
    %v124 = vadd.s32 %v123, 536870912
    %v125 = vshrl.u32 %v124, 30
    %v126 = vshll.u32 %v125, 30
    %v127 = vsub.s32 %v123, %v126
    %vm128 = vcmp.lt.s32.totalorder %v127, 0
    %v129 = vsub.s32 0, %v127
    %v130 = vsel %vm128, %v129, %v127
    %v131 = vclz %v130
    %v132 = vsub.s32 %v131, 2
    %vm133 = vcmp.gt.s32.totalorder 0, %v132
    %v134 = vsel %vm133, 0, %v132
    %v135 = vsub.s32 32, %v134
    %v136 = vshll.u32 %v127, %v134
    %v137 = vshrl.u32 %v119, %v135
    %v138 = vor.u32 %v136, %v137
    %v139 = vsub.s32 4294967266, %v134
    %v140 = vadd.s32 %v139, 127
    %v141 = vshll.u32 %v140, 23
    %v142 = vor.u32 4788187, %v141
    %v143 = vand.u32 2147483647, %v142
    %v145 = vcvt.s32.f32 %v138
    %v146 = vmul.f32 %v145, %v143
    %v147 = vxor.u32 %v146, 2147483648
    %v148 = vsel %vm65, %v147, %v146
    %v149 = vsub.s32 4, %v125
    %v150 = vsel %vm65, %v149, %v125
    %v151 = vsel %vm64, %v59, %v148
    %v152 = vsel %vm64, 0, %v150
    %v153 = vcosq.f32.pop %v151
    %v154 = vsinq.f32.pop %v151
    %vm155 = vweird.f32 %v59
    %v156 = vadd.s32 %v152, 3
    %v157 = vand.u32 %v156, 3
    %vm158 = vcmp.lt.s32.totalorder %v157, 2
    %vm159 = vcmp.eq.s32.totalorder %v157, 0
    %v160 = vxor.u32 %v154, 2147483648
    %v161 = vsel %vm159, %v153, %v160
    %vm162 = vcmp.eq.s32.totalorder %v157, 2
    %v163 = vxor.u32 %v153, 2147483648
    %v164 = vsel %vm162, %v163, %v154
    %v165 = vsel %vm158, %v161, %v164
    %v166 = vsel %vm155, nan, %v165
    %v167 = vand.u32 2147483647, %v60
    %vm168 = vcmp.le.f32.partialorder %v167, 0.7853982
    %vm169 = vcmp.lt.s32.totalorder %v60, 0
    %v170 = vand.u32 %v60, 2139095040
    %v171 = vshrl.u32 %v170, 23
    %v172 = vsub.s32 %v171, 127
    %v173 = vand.u32 2147483647, %v60
    %v174 = vand.u32 %v173, 8388607
    %v175 = vor.u32 %v174, 8388608
    %v176 = vsub.s32 0, %v175
    %v177 = vadd.s32 %v172, 1
    %vm178 = vcmp.gt.s32.totalorder %v177, 0
    %v179 = vsel %vm178, %v177, 0
    %v180 = vshrl.u32 %v179, 5
    %v181 = vand.u32 %v179, 31
    %v182 = vsub.s32 32, %v181
    %v183 = vshrl.u32 683565275, %v182
    %v184 = vshll.u32 683565275, %v181
    %v185 = vshrl.u32 2475754826, %v182
    %v186 = vor.u32 %v184, %v185
    %v187 = vshll.u32 2475754826, %v181
    %v188 = vshrl.u32 2131351028, %v182
    %v189 = vor.u32 %v187, %v188
    %v190 = vshll.u32 2131351028, %v181
    %v191 = vshrl.u32 2102212464, %v182
    %v192 = vor.u32 %v190, %v191
    %v193 = vshll.u32 2102212464, %v181
    %v194 = vshrl.u32 920167782, %v182
    %v195 = vor.u32 %v193, %v194
    %v196 = vshll.u32 920167782, %v181
    %v197 = vshrl.u32 1326507024, %v182
    %v198 = vor.u32 %v196, %v197
    %vm199 = vcmp.lt.s32.totalorder %v180, 1
    %vm200 = vcmp.lt.s32.totalorder %v180, 2
    %vm201 = vcmp.lt.s32.totalorder %v180, 3
    %vm202 = vcmp.lt.s32.totalorder %v180, 4
    %v203 = vsel %vm199, %v183, %v186
    %v204 = vsel %vm202, %v192, 2102212464
    %v205 = vsel %vm201, %v189, %v204
    %v206 = vsel %vm200, %v203, %v205
    %v207 = vsel %vm199, %v186, %v189
    %v208 = vsel %vm202, %v195, 920167782
    %v209 = vsel %vm201, %v192, %v208
    %v210 = vsel %vm200, %v207, %v209
    %v211 = vsel %vm199, %v189, %v192
    %v212 = vsel %vm202, %v198, 1326507024
    %v213 = vsel %vm201, %v195, %v212
    %v214 = vsel %vm200, %v211, %v213
    %v215 = vshll.u32 %v175, 8
    %v216 = vmul.u32.u64.compose %v215, %v214
    %v217 = vextract.low.u32 %v216
    %v218 = vextract.high.u32 %v216
    %v219 = vmul.u32.u64.compose %v215, %v210
    %v220 = vextract.low.u32 %v219
    %v221 = vextract.high.u32 %v219
    %v222 = vmul.u32 %v215, %v206
    %v223 = vadd.s32 %v218, %v220
    %vm224 = vc.u32 %v218, %v220
    %v225 = vadd.s32 %v221, 1
    %v226 = vsel %vm224, %v225, %v221
    %v227 = vadd.s32 %v222, %v226
    %v228 = vadd.s32 %v227, 536870912
    %v229 = vshrl.u32 %v228, 30
    %v230 = vshll.u32 %v229, 30
    %v231 = vsub.s32 %v227, %v230
    %vm232 = vcmp.lt.s32.totalorder %v231, 0
    %v233 = vsub.s32 0, %v231
    %v234 = vsel %vm232, %v233, %v231
    %v235 = vclz %v234
    %v236 = vsub.s32 %v235, 2
    %vm237 = vcmp.gt.s32.totalorder 0, %v236
    %v238 = vsel %vm237, 0, %v236
    %v239 = vsub.s32 32, %v238
    %v240 = vshll.u32 %v231, %v238
    %v241 = vshrl.u32 %v223, %v239
    %v242 = vor.u32 %v240, %v241
    %v243 = vsub.s32 4294967266, %v238
    %v244 = vadd.s32 %v243, 127
    %v245 = vshll.u32 %v244, 23
    %v246 = vor.u32 4788187, %v245
    %v247 = vand.u32 2147483647, %v246
    %v249 = vcvt.s32.f32 %v242
    %v250 = vmul.f32 %v249, %v247
    %v251 = vxor.u32 %v250, 2147483648
    %v252 = vsel %vm169, %v251, %v250
    %v253 = vsub.s32 4, %v229
    %v254 = vsel %vm169, %v253, %v229
    %v255 = vsel %vm168, %v60, %v252
    %v256 = vsel %vm168, 0, %v254
    %v257 = vcosq.f32.pop %v255
    %v258 = vsinq.f32.pop %v255
    %vm259 = vweird.f32 %v60
    %v260 = vadd.s32 %v256, 3
    %v261 = vand.u32 %v260, 3
    %vm262 = vcmp.lt.s32.totalorder %v261, 2
    %vm263 = vcmp.eq.s32.totalorder %v261, 0
    %v264 = vxor.u32 %v258, 2147483648
    %v265 = vsel %vm263, %v257, %v264
    %vm266 = vcmp.eq.s32.totalorder %v261, 2
    %v267 = vxor.u32 %v257, 2147483648
    %v268 = vsel %vm266, %v267, %v258
    %v269 = vsel %vm262, %v265, %v268
    %v270 = vsel %vm259, nan, %v269
    %v271 = vand.u32 2147483647, %v61
    %vm272 = vcmp.le.f32.partialorder %v271, 0.7853982
    %vm273 = vcmp.lt.s32.totalorder %v61, 0
    %v274 = vand.u32 %v61, 2139095040
    %v275 = vshrl.u32 %v274, 23
    %v276 = vsub.s32 %v275, 127
    %v277 = vand.u32 2147483647, %v61
    %v278 = vand.u32 %v277, 8388607
    %v279 = vor.u32 %v278, 8388608
    %v280 = vsub.s32 0, %v279
    %v281 = vadd.s32 %v276, 1
    %vm282 = vcmp.gt.s32.totalorder %v281, 0
    %v283 = vsel %vm282, %v281, 0
    %v284 = vshrl.u32 %v283, 5
    %v285 = vand.u32 %v283, 31
    %v286 = vsub.s32 32, %v285
    %v287 = vshrl.u32 683565275, %v286
    %v288 = vshll.u32 683565275, %v285
    %v289 = vshrl.u32 2475754826, %v286
    %v290 = vor.u32 %v288, %v289
    %v291 = vshll.u32 2475754826, %v285
    %v292 = vshrl.u32 2131351028, %v286
    %v293 = vor.u32 %v291, %v292
    %v294 = vshll.u32 2131351028, %v285
    %v295 = vshrl.u32 2102212464, %v286
    %v296 = vor.u32 %v294, %v295
    %v297 = vshll.u32 2102212464, %v285
    %v298 = vshrl.u32 920167782, %v286
    %v299 = vor.u32 %v297, %v298
    %v300 = vshll.u32 920167782, %v285
    %v301 = vshrl.u32 1326507024, %v286
    %v302 = vor.u32 %v300, %v301
    %vm303 = vcmp.lt.s32.totalorder %v284, 1
    %vm304 = vcmp.lt.s32.totalorder %v284, 2
    %vm305 = vcmp.lt.s32.totalorder %v284, 3
    %vm306 = vcmp.lt.s32.totalorder %v284, 4
    %v307 = vsel %vm303, %v287, %v290
    %v308 = vsel %vm306, %v296, 2102212464
    %v309 = vsel %vm305, %v293, %v308
    %v310 = vsel %vm304, %v307, %v309
    %v311 = vsel %vm303, %v290, %v293
    %v312 = vsel %vm306, %v299, 920167782
    %v313 = vsel %vm305, %v296, %v312
    %v314 = vsel %vm304, %v311, %v313
    %v315 = vsel %vm303, %v293, %v296
    %v316 = vsel %vm306, %v302, 1326507024
    %v317 = vsel %vm305, %v299, %v316
    %v318 = vsel %vm304, %v315, %v317
    %v319 = vshll.u32 %v279, 8
    %v320 = vmul.u32.u64.compose %v319, %v318
    %v321 = vextract.low.u32 %v320
    %v322 = vextract.high.u32 %v320
    %v323 = vmul.u32.u64.compose %v319, %v314
    %v324 = vextract.low.u32 %v323
    %v325 = vextract.high.u32 %v323
    %v326 = vmul.u32 %v319, %v310
    %v327 = vadd.s32 %v322, %v324
    %vm328 = vc.u32 %v322, %v324
    %v329 = vadd.s32 %v325, 1
    %v330 = vsel %vm328, %v329, %v325
    %v331 = vadd.s32 %v326, %v330
    %v332 = vadd.s32 %v331, 536870912
    %v333 = vshrl.u32 %v332, 30
    %v334 = vshll.u32 %v333, 30
    %v335 = vsub.s32 %v331, %v334
    %vm336 = vcmp.lt.s32.totalorder %v335, 0
    %v337 = vsub.s32 0, %v335
    %v338 = vsel %vm336, %v337, %v335
    %v339 = vclz %v338
    %v340 = vsub.s32 %v339, 2
    %vm341 = vcmp.gt.s32.totalorder 0, %v340
    %v342 = vsel %vm341, 0, %v340
    %v343 = vsub.s32 32, %v342
    %v344 = vshll.u32 %v335, %v342
    %v345 = vshrl.u32 %v327, %v343
    %v346 = vor.u32 %v344, %v345
    %v347 = vsub.s32 4294967266, %v342
    %v348 = vadd.s32 %v347, 127
    %v349 = vshll.u32 %v348, 23
    %v350 = vor.u32 4788187, %v349
    %v351 = vand.u32 2147483647, %v350
    %v353 = vcvt.s32.f32 %v346
    %v354 = vmul.f32 %v353, %v351
    %v355 = vxor.u32 %v354, 2147483648
    %v356 = vsel %vm273, %v355, %v354
    %v357 = vsub.s32 4, %v333
    %v358 = vsel %vm273, %v357, %v333
    %v359 = vsel %vm272, %v61, %v356
    %v360 = vsel %vm272, 0, %v358
    %v361 = vcosq.f32.pop %v359
    %v362 = vsinq.f32.pop %v359
    %vm363 = vweird.f32 %v61
    %v364 = vadd.s32 %v360, 3
    %v365 = vand.u32 %v364, 3
    %vm366 = vcmp.lt.s32.totalorder %v365, 2
    %vm367 = vcmp.eq.s32.totalorder %v365, 0
    %v368 = vxor.u32 %v362, 2147483648
    %v369 = vsel %vm367, %v361, %v368
    %vm370 = vcmp.eq.s32.totalorder %v365, 2
    %v371 = vxor.u32 %v361, 2147483648
    %v372 = vsel %vm370, %v371, %v362
    %v373 = vsel %vm366, %v369, %v372
    %v374 = vsel %vm363, nan, %v373
    %v375 = vand.u32 2147483647, %v62
    %vm376 = vcmp.le.f32.partialorder %v375, 0.7853982
    %vm377 = vcmp.lt.s32.totalorder %v62, 0
    %v378 = vand.u32 %v62, 2139095040
    %v379 = vshrl.u32 %v378, 23
    %v380 = vsub.s32 %v379, 127
    %v381 = vand.u32 2147483647, %v62
    %v382 = vand.u32 %v381, 8388607
    %v383 = vor.u32 %v382, 8388608
    %v384 = vsub.s32 0, %v383
    %v385 = vadd.s32 %v380, 1
    %vm386 = vcmp.gt.s32.totalorder %v385, 0
    %v387 = vsel %vm386, %v385, 0
    %v388 = vshrl.u32 %v387, 5
    %v389 = vand.u32 %v387, 31
    %v390 = vsub.s32 32, %v389
    %v391 = vshrl.u32 683565275, %v390
    %v392 = vshll.u32 683565275, %v389
    %v393 = vshrl.u32 2475754826, %v390
    %v394 = vor.u32 %v392, %v393
    %v395 = vshll.u32 2475754826, %v389
    %v396 = vshrl.u32 2131351028, %v390
    %v397 = vor.u32 %v395, %v396
    %v398 = vshll.u32 2131351028, %v389
    %v399 = vshrl.u32 2102212464, %v390
    %v400 = vor.u32 %v398, %v399
    %v401 = vshll.u32 2102212464, %v389
    %v402 = vshrl.u32 920167782, %v390
    %v403 = vor.u32 %v401, %v402
    %v404 = vshll.u32 920167782, %v389
    %v405 = vshrl.u32 1326507024, %v390
    %v406 = vor.u32 %v404, %v405
    %vm407 = vcmp.lt.s32.totalorder %v388, 1
    %vm408 = vcmp.lt.s32.totalorder %v388, 2
    %vm409 = vcmp.lt.s32.totalorder %v388, 3
    %vm410 = vcmp.lt.s32.totalorder %v388, 4
    %v411 = vsel %vm407, %v391, %v394
    %v412 = vsel %vm410, %v400, 2102212464
    %v413 = vsel %vm409, %v397, %v412
    %v414 = vsel %vm408, %v411, %v413
    %v415 = vsel %vm407, %v394, %v397
    %v416 = vsel %vm410, %v403, 920167782
    %v417 = vsel %vm409, %v400, %v416
    %v418 = vsel %vm408, %v415, %v417
    %v419 = vsel %vm407, %v397, %v400
    %v420 = vsel %vm410, %v406, 1326507024
    %v421 = vsel %vm409, %v403, %v420
    %v422 = vsel %vm408, %v419, %v421
    %v423 = vshll.u32 %v383, 8
    %v424 = vmul.u32.u64.compose %v423, %v422
    %v425 = vextract.low.u32 %v424
    %v426 = vextract.high.u32 %v424
    %v427 = vmul.u32.u64.compose %v423, %v418
    %v428 = vextract.low.u32 %v427
    %v429 = vextract.high.u32 %v427
    %v430 = vmul.u32 %v423, %v414
    %v431 = vadd.s32 %v426, %v428
    %vm432 = vc.u32 %v426, %v428
    %v433 = vadd.s32 %v429, 1
    %v434 = vsel %vm432, %v433, %v429
    %v435 = vadd.s32 %v430, %v434
    %v436 = vadd.s32 %v435, 536870912
    %v437 = vshrl.u32 %v436, 30
    %v438 = vshll.u32 %v437, 30
    %v439 = vsub.s32 %v435, %v438
    %vm440 = vcmp.lt.s32.totalorder %v439, 0
    %v441 = vsub.s32 0, %v439
    %v442 = vsel %vm440, %v441, %v439
    %v443 = vclz %v442
    %v444 = vsub.s32 %v443, 2
    %vm445 = vcmp.gt.s32.totalorder 0, %v444
    %v446 = vsel %vm445, 0, %v444
    %v447 = vsub.s32 32, %v446
    %v448 = vshll.u32 %v439, %v446
    %v449 = vshrl.u32 %v431, %v447
    %v450 = vor.u32 %v448, %v449
    %v451 = vsub.s32 4294967266, %v446
    %v452 = vadd.s32 %v451, 127
    %v453 = vshll.u32 %v452, 23
    %v454 = vor.u32 4788187, %v453
    %v455 = vand.u32 2147483647, %v454
    %v457 = vcvt.s32.f32 %v450
    %v458 = vmul.f32 %v457, %v455
    %v459 = vxor.u32 %v458, 2147483648
    %v460 = vsel %vm377, %v459, %v458
    %v461 = vsub.s32 4, %v437
    %v462 = vsel %vm377, %v461, %v437
    %v463 = vsel %vm376, %v62, %v460
    %v464 = vsel %vm376, 0, %v462
    %v465 = vcosq.f32.pop %v463
    %v466 = vsinq.f32.pop %v463
    %vm467 = vweird.f32 %v62
    %v468 = vadd.s32 %v464, 3
    %v469 = vand.u32 %v468, 3
    %vm470 = vcmp.lt.s32.totalorder %v469, 2
    %vm471 = vcmp.eq.s32.totalorder %v469, 0
    %v472 = vxor.u32 %v466, 2147483648
    %v473 = vsel %vm471, %v465, %v472
    %vm474 = vcmp.eq.s32.totalorder %v469, 2
    %v475 = vxor.u32 %v465, 2147483648
    %v476 = vsel %vm474, %v475, %v466
    %v477 = vsel %vm470, %v473, %v476
    %v478 = vsel %vm467, nan, %v477
    %v479 = vstv %s37
    %v480 = vmul.f32 %v479, %v166
    %v481 = vmul.f32 %v479, %v270
    %v482 = vmul.f32 %v479, %v374
    %v483 = vmul.f32 %v479, %v478
    %v484 = vstv %s40
    %v485 = vmul.f32 %v484, %v480
    %v486 = vmul.f32 %v484, %v481
    %v487 = vmul.f32 %v484, %v482
    %v488 = vmul.f32 %v484, %v483
    %489 = vst [vmem:[#allocation7] sm:$0xff] %v485
    %490 = vst [vmem:[#allocation7 + $0x8] sm:$0xff] %v486
    %491 = vst [vmem:[#allocation7 + $0x10] sm:$0xff] %v487
    %492 = vst [vmem:[#allocation7 + $0x18] sm:$0xff] %v488
    // Predicated region
    $region18: #{tpu_custom_call.1} parent=1 // pred_check
      _
    $region19: #{tpu_custom_call.1} parent=1 // pred_check_branch
      %494 = sbr.rel (0) target = $region21
    $region20: #{tpu_custom_call.1} parent=1 // pred_region
      %s496 = ssub.s32 512, 512
      %497 = vsyncadd [#allocation4], %s496
      %s499 = sshll.u32 [#allocation7], 4
      %s500 = int_to_ptr.vmem [resolvable:$true] %s499
      %502 = dma.vmem_to_hbm [thread:$0]  %s500, 512, %s2, [#allocation4]
    $region21: #{tpu_custom_call.1} parent=1 // pred_fallthru
      _
    // Predicated region
    $region22: #{tpu_custom_call.1} parent=1 // pred_check
      _
    $region23: #{tpu_custom_call.1} parent=1 // pred_check_branch
      %504 = sbr.rel (0) target = $region25
    $region24: #{tpu_custom_call.1} parent=1 // pred_region
      %505 = dma.done [#allocation4], 512
    $region25: #{tpu_custom_call.1} parent=1 // pred_fallthru
      _
    %506 = vsyncpa [#allocation3], 1
    %507 = vsyncpa [#allocation4], 1
    %508 = vsyncpa [#allocation5], 1

</llo_original>
